<compile_context>
chip_gen: v6e
topology: v6e:2x2x1
jax: 0.10.0
libtpu: 0.0.40
codegen_flags: <defaults>
</compile_context>

<pallas_src>
import jax
import jax.numpy as jnp
from jax.experimental import pallas as pl
from jax.experimental.pallas import tpu as pltpu


def _round_up(x, m):
    return ((x + m - 1) // m) * m


def _pick_tile(dim, align, cap):
    """Largest tile (multiple of `align`, <= cap) minimizing padded size."""
    if dim <= cap:
        t = _round_up(dim, align)
        return t, t
    best_t, best_pad = None, None
    t = (cap // align) * align
    while t >= align:
        pad = _round_up(dim, t)
        if best_pad is None or pad < best_pad:
            best_t, best_pad = t, pad
        t -= align
    return best_t, best_pad


def _vmem_capacity_bytes():
    try:
        return int(pltpu.get_tpu_info().vmem_capacity_bytes)
    except Exception:
        return 64 * 1024 * 1024  # conservative default (v7x per-TC VMEM)


def _hw_caps(itemsize):
    """Per-generation tile caps and scoped-VMEM budget."""
    vmem = _vmem_capacity_bytes()
    if vmem >= 100 * 1024 * 1024:
        # v5e / v6e: 128 MiB physical VMEM -> bigger blocks amortize the
        # ~0.35 us per-grid-step overhead and push HBM utilization up.
        caps = dict(tm_cap=512, tn_cap=1024, tk_cap=1024,
                    vmem_limit=96 * 1024 * 1024)
    else:
        # v7x: only 64 MiB VMEM per TC -> conservative tiles, headroom left
        # for Mosaic internal scratch.
        caps = dict(tm_cap=256, tn_cap=512, tk_cap=512,
                    vmem_limit=48 * 1024 * 1024)
    if itemsize <= 2:
        caps["tk_cap"] *= 2  # bf16 halves the footprint -> deeper K tiles
    return caps


# ----------------------------------------------------------------------------
# Kernels
# ----------------------------------------------------------------------------
def _linear_kernel_noacc(x_ref, w_ref, b_ref, o_ref):
    # Single K step: whole contraction is resident, store directly (no scratch).
    acc = jnp.dot(x_ref[...], w_ref[...], preferred_element_type=jnp.float32)
    o_ref[...] = (acc + b_ref[...]).astype(o_ref.dtype)


def _linear_kernel_acc(x_ref, w_ref, b_ref, o_ref, acc_ref):
    k = pl.program_id(2)

    @pl.when(k == 0)
    def _():
        acc_ref[...] = jnp.zeros_like(acc_ref)

    acc_ref[...] += jnp.dot(x_ref[...], w_ref[...],
                            preferred_element_type=jnp.float32)

    @pl.when(k == pl.num_programs(2) - 1)
    def _():
        o_ref[...] = (acc_ref[...] + b_ref[...]).astype(o_ref.dtype)


# ----------------------------------------------------------------------------
# Parameter setup (done ONCE, outside the hot forward path)
# ----------------------------------------------------------------------------
def prepare_linear_params(weight, bias, dtype=None):
    """weight: (out_features, in_features) PyTorch layout; bias: (out_features,).

    Transposes the weight to the MXU-canonical (K, N) layout, pads N to a
    lane-dense multiple of 128 and K to the K-tile, and picks hardware-aware
    tile sizes -- all once, so the per-call path does no pad/transpose on the
    (static) parameters.
    """
    N, K = weight.shape
    if dtype is None:
        dtype = weight.dtype
    dtype = jnp.dtype(dtype)
    caps = _hw_caps(dtype.itemsize)

    tn, N_pad = _pick_tile(N, 128, caps["tn_cap"])
    if K <= caps["tk_cap"]:
        tk, K_pad = K, K          # single K step; full-dim block needs no K pad
    else:
        tk, K_pad = _pick_tile(K, 128, caps["tk_cap"])

    w_kn = jnp.asarray(weight, dtype).T            # (K, N): K sublanes, N lanes
    if (K_pad, N_pad) != (K, N):
        w_kn = jnp.pad(w_kn, ((0, K_pad - K), (0, N_pad - N)))

    b_f32 = jnp.asarray(bias, jnp.float32)
    b_pad = b_f32 if N_pad == N else jnp.pad(b_f32, (0, N_pad - N))
    b2d = b_pad.reshape(1, N_pad)

    return dict(w_kn=w_kn, b2d=b2d, bias=b_f32,
                N=N, K=K, N_pad=N_pad, K_pad=K_pad, tn=tn, tk=tk,
                dtype=dtype, caps=caps)


# ----------------------------------------------------------------------------
# Forward
# ----------------------------------------------------------------------------
def linear_forward(x, params, *, force_pallas=False,
                   small_shape_threshold=1 << 18):
    """y = x @ W^T + b with x: (M, in_features)."""
    M, K = x.shape
    assert K == params["K"], "in_features mismatch"
    N = params["N"]

    # Tiny problems are a single MXU issue: fixed pallas_call/grid overhead
    # dominates, let XLA's fused dot handle it.
    if not force_pallas and M * N * K < small_shape_threshold:
        y = jnp.dot(x.astype(params["dtype"]), params["w_kn"][:K, :N],
                    preferred_element_type=jnp.float32) + params["bias"]
        return y.astype(x.dtype)

    caps = params["caps"]
    tn, tk = params["tn"], params["tk"]
    N_pad, K_pad = params["N_pad"], params["K_pad"]

    tm, M_pad = _pick_tile(M, 8, caps["tm_cap"])

    x_p = x.astype(params["dtype"])
    if (M_pad, K_pad) != (M, K):
        x_p = jnp.pad(x_p, ((0, M_pad - M), (0, K_pad - K)))

    ni, nj, nk = M_pad // tm, N_pad // tn, K_pad // tk
    # N-major (disjoint weight tiles per TC on v7x), M inner (weight block
    # constant across the inner loop when nk == 1 -> fetched once), K last.
    grid = (nj, ni, nk)

    itemsize = params["dtype"].itemsize
    out_itemsize = jnp.dtype(x.dtype).itemsize
    w_traffic = (K_pad * N_pad) * (1 if nk == 1 else ni)
    cost = pl.CostEstimate(
        flops=2 * M_pad * N_pad * K_pad,
        transcendentals=0,
        bytes_accessed=(nj * M_pad * K_pad * itemsize
                        + w_traffic * itemsize
                        + M_pad * N_pad * out_itemsize
                        + N_pad * 4))

    in_specs = [
        pl.BlockSpec((tm, tk), lambda j, i, k: (i, k)),   # x tile
        pl.BlockSpec((tk, tn), lambda j, i, k: (k, j)),   # weight tile (K, N)
        pl.BlockSpec((1, tn), lambda j, i, k: (0, j)),    # bias tile (f32)
    ]
    out_spec = pl.BlockSpec((tm, tn), lambda j, i, k: (i, j))

    if nk == 1:
        kernel, scratch = _linear_kernel_noacc, []
    else:
        kernel, scratch = _linear_kernel_acc, [pltpu.VMEM((tm, tn), jnp.float32)]

    out = pl.pallas_call(
        kernel,
        out_shape=jax.ShapeDtypeStruct((M_pad, N_pad), x.dtype),
        grid_spec=pltpu.PrefetchScalarGridSpec(
            num_scalar_prefetch=0,
            grid=grid,
            in_specs=in_specs,
            out_specs=out_spec,
            scratch_shapes=scratch),
        compiler_params=pltpu.CompilerParams(
            dimension_semantics=("parallel", "parallel", "arbitrary"),
            vmem_limit_bytes=caps["vmem_limit"]),
        cost_estimate=cost,
    )(x_p, params["w_kn"], params["b2d"])

    if (M_pad, N_pad) != (M, N):
        out = out[:M, :N]
    return out


if __name__ == "__main__":
    key = jax.random.PRNGKey(0)
    kx, kw, kb = jax.random.split(key, 3)

    batch, in_features, out_features = 8, 32, 16

    x = jax.random.normal(kx, (batch, in_features), dtype=jnp.float32)
    # Deterministic params (mimics nn.Linear uniform(-1/sqrt(K), 1/sqrt(K)))
    bound = 1.0 / (in_features ** 0.5)
    weight = jax.random.uniform(kw, (out_features, in_features),
                                minval=-bound, maxval=bound, dtype=jnp.float32)
    bias = jax.random.uniform(kb, (out_features,),
                              minval=-bound, maxval=bound, dtype=jnp.float32)

    y_ref = x @ weight.T + bias

    # f32 path (force the Pallas kernel even at demo size).
    params_f32 = prepare_linear_params(weight, bias, dtype=jnp.float32)
    y = linear_forward(x, params_f32, force_pallas=True)
    jax.block_until_ready(y)
    assert y.shape == (batch, out_features)
    assert jnp.allclose(y, y_ref, atol=1e-5, rtol=1e-5)

    # bf16 operand path (production default: halves HBM traffic / VMEM, MXU-
    # native rate) with f32 accumulation + f32 bias add.
    params_bf16 = prepare_linear_params(weight, bias, dtype=jnp.bfloat16)
    y16 = linear_forward(x.astype(jnp.bfloat16), params_bf16, force_pallas=True)
    jax.block_until_ready(y16)
    assert jnp.allclose(y16.astype(jnp.float32), y_ref, atol=5e-2, rtol=5e-2)

    print("KERNEL_OK")
</pallas_src>

<mosaic_0001>
module attributes {stable_mosaic.version = 11 : i64} {
  func.func @_linear_kernel_noacc(%arg0: i32, %arg1: i32, %arg2: i32, %arg3: memref<8x32xf32, #tpu.memory_space<vmem>>, %arg4: memref<32x128xf32, #tpu.memory_space<vmem>>, %arg5: memref<1x128xf32, #tpu.memory_space<vmem>>, %arg6: memref<8x128xf32, #tpu.memory_space<vmem>>) attributes {dimension_semantics = [#tpu.dimension_semantics<parallel>, #tpu.dimension_semantics<parallel>, #tpu.dimension_semantics<arbitrary>], iteration_bounds = array<i64: 1, 1, 1>, scalar_prefetch = 0 : i64, scratch_operands = 0 : i64, tpu.core_type = #tpu.core_type<tc>, window_params = [{transform_indices = @transform_0, window_bounds = array<i64: 8, 32>}, {transform_indices = @transform_1, window_bounds = array<i64: 32, 128>}, {transform_indices = @transform_2, window_bounds = array<i64: 1, 128>}, {transform_indices = @transform_3, window_bounds = array<i64: 8, 128>}]} {
    %c0 = arith.constant 0 : index
    %c0_0 = arith.constant 0 : index
    %0 = vector.load %arg3[%c0, %c0_0] : memref<8x32xf32, #tpu.memory_space<vmem>>, vector<8x32xf32>
    %c0_1 = arith.constant 0 : index
    %c0_2 = arith.constant 0 : index
    %1 = vector.load %arg4[%c0_1, %c0_2] : memref<32x128xf32, #tpu.memory_space<vmem>>, vector<32x128xf32>
    %cst = arith.constant dense<0.000000e+00> : vector<8x128xf32>
    %2 = tpu.matmul %0, %1, %cst {dimension_numbers = #tpu.dot_dimension_numbers<[1], [0], [0], [1], [0, 0, 1, 1], [], []>} : vector<8x32xf32>, vector<32x128xf32>, vector<8x128xf32> -> vector<8x128xf32>
    %c0_3 = arith.constant 0 : index
    %c0_4 = arith.constant 0 : index
    %3 = vector.load %arg5[%c0_3, %c0_4] : memref<1x128xf32, #tpu.memory_space<vmem>>, vector<1x128xf32>
    %4 = vector.broadcast %3 : vector<1x128xf32> to vector<8x128xf32>
    %5 = arith.addf %2, %4 : vector<8x128xf32>
    %c0_5 = arith.constant 0 : index
    %c0_6 = arith.constant 0 : index
    %6 = vector.load %arg6[%c0_5, %c0_6] : memref<8x128xf32, #tpu.memory_space<vmem>>, vector<8x128xf32>
    tpu.vector_store %arg6[%c0_5, %c0_6], %5 {strides = array<i32>} : memref<8x128xf32, #tpu.memory_space<vmem>>, vector<8x128xf32>,
    return
  }
  func.func @transform_0(%arg0: i32, %arg1: i32, %arg2: i32) -> (i32, i32) {
    %c0_i32 = arith.constant 0 : i32
    return %arg1, %arg2 : i32, i32
  }
  func.func @transform_1(%arg0: i32, %arg1: i32, %arg2: i32) -> (i32, i32) {
    %c0_i32 = arith.constant 0 : i32
    return %arg2, %arg0 : i32, i32
  }
  func.func @transform_2(%arg0: i32, %arg1: i32, %arg2: i32) -> (i32, i32) {
    %c0_i32 = arith.constant 0 : i32
    %c0_i32_0 = arith.constant 0 : i32
    return %c0_i32, %arg0 : i32, i32
  }
  func.func @transform_3(%arg0: i32, %arg1: i32, %arg2: i32) -> (i32, i32) {
    %c0_i32 = arith.constant 0 : i32
    return %arg1, %arg0 : i32, i32
  }
}

</mosaic_0001>

<llo_original>
// kernel: tpu_custom_call.1
$region0: #{tpu_custom_call.1}
  #allocation0 [shape = 'u32[]', space=smem, size = 0x4, offset = 0x4, fixed_abs, tag = 'smem constant byte address 0x4 - core index']
  #allocation1 [shape = 'u32[144,128]{1,0:T(1,128)}', space=vmem, size = 0x12000, scoped, tag = 'internal scratch']
  %s0 = inlined_call_operand.hbm [shape: f32[8,32], index: 0, kind: input, shape index: {}]
  %s1 = inlined_call_operand.hbm [shape: f32[32,128], index: 1, kind: input, shape index: {}]
  %s2 = inlined_call_operand.vmem [shape: f32[1,128], index: 2, kind: input, shape index: {}]
  %s3 = inlined_call_operand.hbm [shape: f32[8,128], index: 3, kind: output, shape index: {}]
  %s4 = sld [smem:[#allocation0]]
  $region30: #{tpu_custom_call.1} parent=0
    _
  %s6 = ssub.s32 1, %s4
  %s7 = scalar_select 0, %s6, %s4
  $region1: #{tpu_custom_call.1} parent=0
    #allocation2 [shape = 'u8[4096]{0}', space=vmem, size = 0x1000, scoped, tag = 'input window, operand 0, single buffered']
    #allocation3 [shape = 's32[1]{0}', space=sflag, size = 0x4, scoped, tag = 'scoped memory for tpu_custom_call.1']
    #allocation4 [shape = 's32[1]{0}', space=sflag, size = 0x4, scoped, tag = 'scoped memory for tpu_custom_call.1']
    #allocation5 [shape = 'u8[16384]{0}', space=vmem, size = 0x4000, scoped, tag = 'input window, operand 1, single buffered']
    #allocation6 [shape = 's32[1]{0}', space=sflag, size = 0x4, scoped, tag = 'scoped memory for tpu_custom_call.1']
    #allocation7 [shape = 'u8[4096]{0}', space=vmem, size = 0x1000, scoped, tag = 'output window, operand 0, single buffered']
    %8 = vsyncpa [#allocation3], 0
    %9 = vsyncpa [#allocation6], 0
    %10 = vsyncpa [#allocation4], 0
    // Predicated region
    $region2: #{tpu_custom_call.1} parent=1 // pred_check
      _
    $region3: #{tpu_custom_call.1} parent=1 // pred_check_branch
      %12 = sbr.rel (0) target = $region5
    $region4: #{tpu_custom_call.1} parent=1 // pred_region
      %s14 = ssub.s32 128, 128
      %15 = vsyncadd [#allocation3], %s14
      %s17 = sshll.u32 [#allocation2], 4
      %s18 = int_to_ptr.vmem [resolvable:$true] %s17
      %20 = dma.hbm_to_vmem [thread:$0]  %s0, 128, %s18, [#allocation3]
    $region5: #{tpu_custom_call.1} parent=1 // pred_fallthru
      _
    // Predicated region
    $region6: #{tpu_custom_call.1} parent=1 // pred_check
      _
    $region7: #{tpu_custom_call.1} parent=1 // pred_check_branch
      %22 = sbr.rel (0) target = $region9
    $region8: #{tpu_custom_call.1} parent=1 // pred_region
      %s24 = ssub.s32 512, 512
      %25 = vsyncadd [#allocation6], %s24
      %s26 = sshll.u32 [#allocation5], 4
      %s27 = int_to_ptr.vmem [resolvable:$true] %s26
      %32 = dma.hbm_to_vmem [thread:$0]  %s1, 512, %s27, [#allocation6], 128, 128, 8
    $region9: #{tpu_custom_call.1} parent=1 // pred_fallthru
      _
    // Predicated region
    $region10: #{tpu_custom_call.1} parent=1 // pred_check
      _
    $region11: #{tpu_custom_call.1} parent=1 // pred_check_branch
      %34 = sbr.rel (0) target = $region13
    $region12: #{tpu_custom_call.1} parent=1 // pred_region
      _
    $region13: #{tpu_custom_call.1} parent=1 // pred_fallthru
      _
    // Predicated region
    $region14: #{tpu_custom_call.1} parent=1 // pred_check
      _
    $region15: #{tpu_custom_call.1} parent=1 // pred_check_branch
      %36 = sbr.rel (0) target = $region17
    $region16: #{tpu_custom_call.1} parent=1 // pred_region
      %37 = dma.done [#allocation3], 128
    $region17: #{tpu_custom_call.1} parent=1 // pred_fallthru
      _
    // Predicated region
    $region18: #{tpu_custom_call.1} parent=1 // pred_check
      _
    $region19: #{tpu_custom_call.1} parent=1 // pred_check_branch
      %39 = sbr.rel (0) target = $region21
    $region20: #{tpu_custom_call.1} parent=1 // pred_region
      %40 = dma.done [#allocation6], 512
    $region21: #{tpu_custom_call.1} parent=1 // pred_fallthru
      _
    %v41 = vld [vmem:[#allocation2] sm:$0xff]
    %v42 = vld [vmem:[#allocation5] sm:$0xff]
    %v43 = vld [vmem:[#allocation5 + $0x8] sm:$0xff]
    %v44 = vld [vmem:[#allocation5 + $0x10] sm:$0xff]
    %v45 = vld [vmem:[#allocation5 + $0x18] sm:$0xff]
    %v46 = vld [vmem:[%s2] sm:$0x1]
    %v48 = vlaneseq
    %v49 = vshrl.u32 %v48, 7
    %v50 = vsub.s32 0, %v49
    %v51 = vrot.slane %v46, %v50
    %vm53 = vcmask 261120
    %v55 = vsel %vm53, %v41, 0
    %57 = vmatprep.subr.mxu0 0.0
    %58 = vmatpush1.msra.mxu0 0.0
    %59 = vmatprep.subr.mxu0 0.0
    %60 = vmatpush1.msra.mxu0 0.0
    %61 = vmatprep.subr.mxu0 0.0
    %62 = vmatpush1.msra.mxu0 0.0
    %63 = vmatprep.subr.mxu0 0.0
    %64 = vmatpush1.msra.mxu0 0.0
    %65 = vmatprep.subr.mxu0 0.0
    %66 = vmatpush1.msra.mxu0 0.0
    %67 = vmatprep.subr.mxu0 0.0
    %68 = vmatpush1.msra.mxu0 0.0
    %69 = vmatprep.subr.mxu0 0.0
    %70 = vmatpush1.msra.mxu0 0.0
    %71 = vmatprep.subr.mxu0 0.0
    %72 = vmatpush1.msra.mxu0 0.0
    %73 = vmatprep.subr.mxu0 0.0
    %74 = vmatpush1.msra.mxu0 0.0
    %75 = vmatprep.subr.mxu0 0.0
    %76 = vmatpush1.msra.mxu0 0.0
    %77 = vmatprep.subr.mxu0 0.0
    %78 = vmatpush1.msra.mxu0 0.0
    %79 = vmatprep.subr.mxu0 0.0
    %80 = vmatpush1.msra.mxu0 0.0
    %81 = vmatprep.subr.mxu0 0.0
    %82 = vmatpush1.msra.mxu0 %v45
    %83 = vmatprep.subr.mxu0 0.0
    %84 = vmatpush1.msra.mxu0 %v44
    %85 = vmatprep.subr.mxu0 0.0
    %86 = vmatpush1.msra.mxu0 %v43
    %87 = vmatprep.subr.mxu0 0.0
    %88 = vmatpush1.msra.mxu0 %v42
    %89 = vmatprep.subr.mxu0 0.0
    %90 = vmatpush2.msra.mxu0 0.0
    %91 = vmatprep.subr.mxu0 0.0
    %92 = vmatpush2.msra.mxu0 0.0
    %93 = vmatprep.subr.mxu0 0.0
    %94 = vmatpush2.msra.mxu0 0.0
    %95 = vmatprep.subr.mxu0 0.0
    %96 = vmatpush2.msra.mxu0 0.0
    %97 = vmatprep.subr.mxu0 0.0
    %98 = vmatpush2.msra.mxu0 0.0
    %99 = vmatprep.subr.mxu0 0.0
    %100 = vmatpush2.msra.mxu0 0.0
    %101 = vmatprep.subr.mxu0 0.0
    %102 = vmatpush2.msra.mxu0 0.0
    %103 = vmatprep.subr.mxu0 0.0
    %104 = vmatpush2.msra.mxu0 0.0
    %105 = vmatprep.subr.mxu0 0.0
    %106 = vmatpush2.msra.mxu0 0.0
    %107 = vmatprep.subr.mxu0 0.0
    %108 = vmatpush2.msra.mxu0 0.0
    %109 = vmatprep.subr.mxu0 0.0
    %110 = vmatpush2.msra.mxu0 0.0
    %111 = vmatprep.subr.mxu0 0.0
    %112 = vmatpush2.msra.mxu0 0.0
    %113 = vmatprep.subr.mxu0 0.0
    %114 = vmatpush2.msra.mxu0 0.0
    %115 = vmatprep.subr.mxu0 0.0
    %116 = vmatpush2.msra.mxu0 0.0
    %117 = vmatprep.subr.mxu0 0.0
    %118 = vmatpush2.msra.mxu0 0.0
    %119 = vmatprep.subr.mxu0 0.0
    %120 = vmatpush2.msra.mxu0 0.0
    %121 = vmatprep.mubr.f32.mxu0 0.0
    %122 = vmatmul.mubr.f32.gmra.mxu0 %v55
    %v123 = vpop.f32.mrf.mxu0
    %v124 = vadd.f32 %v51, %v123
    %v125 = vpop.f32.mrf.mxu0
    %126 = vdwg.mxu0
    %127 = vst [vmem:[#allocation7] sm:$0xff] %v124
    // Predicated region
    $region22: #{tpu_custom_call.1} parent=1 // pred_check
      _
    $region23: #{tpu_custom_call.1} parent=1 // pred_check_branch
      %129 = sbr.rel (0) target = $region25
    $region24: #{tpu_custom_call.1} parent=1 // pred_region
      %s131 = ssub.s32 128, 128
      %132 = vsyncadd [#allocation4], %s131
      %s134 = sshll.u32 [#allocation7], 4
      %s135 = int_to_ptr.vmem [resolvable:$true] %s134
      %137 = dma.vmem_to_hbm [thread:$0]  %s135, 128, %s3, [#allocation4]
    $region25: #{tpu_custom_call.1} parent=1 // pred_fallthru
      _
    // Predicated region
    $region26: #{tpu_custom_call.1} parent=1 // pred_check
      _
    $region27: #{tpu_custom_call.1} parent=1 // pred_check_branch
      %139 = sbr.rel (0) target = $region29
    $region28: #{tpu_custom_call.1} parent=1 // pred_region
      %140 = dma.done [#allocation4], 128
    $region29: #{tpu_custom_call.1} parent=1 // pred_fallthru
      _
    %141 = vsyncpa [#allocation3], 1
    %142 = vsyncpa [#allocation6], 1
    %143 = vsyncpa [#allocation4], 1

</llo_original>
